<compile_context>
chip_gen: v5e
topology: v5e:2x2
jax: 0.10.0
libtpu: 0.0.40
codegen_flags: <defaults>
</compile_context>

<pallas_src>
import functools

import jax
import jax.numpy as jnp
from jax.experimental import pallas as pl
from jax.experimental.pallas import tpu as pltpu


# ----------------------------------------------------------------------------
# Fused single-pass kernel: one (Nb, C, HW) block per grid step.
# ----------------------------------------------------------------------------
def channel_attention_kernel(x_ref, w1_ref, b1_ref, w2_ref, b2_ref, o_ref, *,
                             inv_hw):
    # Block: (Nb, C, HW).  Last dim is the FULL spatial extent, so the pooled
    # reduction sees exactly the valid elements (Mosaic masks any physical
    # lane padding of a non-128-multiple last dim when lowering the reduce).
    x = x_ref[...]                                               # (Nb, C, HW)

    # AdaptiveAvgPool2d(1).  The f32 cast is consumed only by the reduction,
    # so it fuses per-vreg instead of materializing an f32 block copy.
    pooled = jnp.sum(x.astype(jnp.float32), axis=-1) * inv_hw    # (Nb, C)

    # Conv2d(C, C_sq, 1) on a 1x1 map: VPU broadcast-mul + lane reduce
    # (avoids a degenerate 1-column MXU matmul).
    h = jnp.sum(w1_ref[...][None, :, :] * pooled[:, None, :],
                axis=-1) + b1_ref[...]                           # (Nb, C_sq)
    h = jnp.maximum(h, 0.0)                                      # ReLU

    # Conv2d(C_sq, C, 1)
    y = jnp.sum(w2_ref[...][None, :, :] * h[:, None, :],
                axis=-1) + b2_ref[...]                           # (Nb, C)
    y = jax.nn.sigmoid(y)                                        # Sigmoid

    # Scale in the input dtype (matches the module; no f32 block temp).
    o_ref[...] = x * y.astype(x.dtype)[:, :, None]


# ----------------------------------------------------------------------------
# HW-tiled fallback kernels (for images too large for a single VMEM block).
# Pass 1: accumulate the per-channel sum across HW tiles, then squeeze/excite.
# Pass 2: re-read x tile-by-tile and apply the per-channel scale.
# ----------------------------------------------------------------------------
def _pool_excite_kernel(x_ref, w1_ref, b1_ref, w2_ref, b2_ref, y_ref, *,
                        inv_hw, hw, tile_hw, mask_tail):
    t = pl.program_id(1)

    @pl.when(t == 0)
    def _():
        y_ref[...] = jnp.zeros_like(y_ref)

    xs = x_ref[...].astype(jnp.float32)                          # (1, C, tile)
    if mask_tail:
        # Last tile may extend past HW; its padding lanes hold stale data.
        lane = jax.lax.broadcasted_iota(jnp.int32, xs.shape, 2)
        xs = jnp.where(t * tile_hw + lane < hw, xs, 0.0)
    y_ref[...] += jnp.sum(xs, axis=-1)[:, None, :]               # (1, 1, C)

    @pl.when(t == pl.num_programs(1) - 1)
    def _():
        pooled = y_ref[...][:, 0, :] * inv_hw                    # (1, C)
        h = jnp.sum(w1_ref[...][None, :, :] * pooled[:, None, :],
                    axis=-1) + b1_ref[...]
        h = jnp.maximum(h, 0.0)
        y = jnp.sum(w2_ref[...][None, :, :] * h[:, None, :],
                    axis=-1) + b2_ref[...]
        y_ref[...] = jax.nn.sigmoid(y)[:, None, :]


def _scale_kernel(x_ref, y_ref, o_ref):
    x = x_ref[...]                                               # (1, C, tile)
    y = y_ref[...][:, 0, :]                                      # (1, C)
    o_ref[...] = x * y.astype(x.dtype)[:, :, None]


# ----------------------------------------------------------------------------
# Sizing helpers.
# ----------------------------------------------------------------------------
def _vmem_budgets():
    """(block_budget_bytes, vmem_limit_bytes) sized to the chip generation."""
    try:
        cap = pltpu.get_tpu_info().vmem_capacity_bytes
    except Exception:
        cap = 64 * 1024 * 1024            # assume the smallest (v7x) if unknown
    limit = min(cap * 3 // 4, 96 * 1024 * 1024)   # ~48 MiB v7x, ~96 MiB v5e/v6e
    return limit // 3, limit


def _pick_batch_block(n, bytes_per_image, budget_bytes, *,
                      min_steps=8, min_block_bytes=1 << 20):
    """Pick Nb (a divisor of N) so the double-buffered in+out footprint
    (4 * Nb * bytes_per_image) fits the VMEM budget, preferring enough grid
    steps for DMA pipelining / megacore sharding while keeping blocks large
    enough to amortize per-step overhead.  Returns 0 if even a single image
    overflows the budget (caller falls back to the HW-tiled path)."""
    fitting = [nb for nb in range(1, n + 1)
               if n % nb == 0 and 4 * nb * bytes_per_image <= budget_bytes]
    if not fitting:
        return 0
    preferred = [nb for nb in fitting
                 if n // nb >= min_steps and nb * bytes_per_image >= min_block_bytes]
    if preferred:
        return max(preferred)
    relaxed = [nb for nb in fitting if n // nb >= 2]
    if relaxed:
        big = [nb for nb in relaxed if nb * bytes_per_image >= min_block_bytes]
        return min(big) if big else max(relaxed)
    return max(fitting)


# ----------------------------------------------------------------------------
# Wrappers.
# ----------------------------------------------------------------------------
def _channel_attention_hw_tiled(x_flat, w1f, b1_row, w2f, b2_row, *,
                                hw, c, c_sq, itemsize,
                                block_budget_bytes, vmem_limit_bytes,
                                param_bytes):
    N = x_flat.shape[0]
    # Largest lane-dense spatial tile whose double-buffered in+out footprint
    # fits the budget (the scale pass is the binding one).
    tile_hw = (block_budget_bytes // (4 * c * itemsize)) // 128 * 128
    tile_hw = max(128, tile_hw)
    tile_hw = min(tile_hw, -(-hw // 128) * 128)
    n_t = pl.cdiv(hw, tile_hw)
    mask_tail = (hw % tile_hw) != 0

    pool_kernel = functools.partial(
        _pool_excite_kernel, inv_hw=1.0 / hw, hw=hw, tile_hw=tile_hw,
        mask_tail=mask_tail)

    y = pl.pallas_call(
        pool_kernel,
        out_shape=jax.ShapeDtypeStruct((N, 1, c), jnp.float32),
        grid_spec=pltpu.PrefetchScalarGridSpec(
            num_scalar_prefetch=0,
            grid=(N, n_t),
            in_specs=[
                pl.BlockSpec((1, c, tile_hw), lambda n, t: (n, 0, t)),
                pl.BlockSpec((c_sq, c), lambda n, t: (0, 0)),
                pl.BlockSpec((1, c_sq), lambda n, t: (0, 0)),
                pl.BlockSpec((c, c_sq), lambda n, t: (0, 0)),
                pl.BlockSpec((1, c), lambda n, t: (0, 0)),
            ],
            out_specs=pl.BlockSpec((1, 1, c), lambda n, t: (n, 0, 0)),
        ),
        compiler_params=pltpu.CompilerParams(
            dimension_semantics=("parallel", "arbitrary"),
            vmem_limit_bytes=vmem_limit_bytes,
        ),
        cost_estimate=pl.CostEstimate(
            flops=int(2 * N * c * hw + 4 * N * c * c_sq),
            transcendentals=int(N * c),
            bytes_accessed=int(N * c * hw * itemsize + param_bytes),
        ),
    )(x_flat, w1f, b1_row, w2f, b2_row)

    out_flat = pl.pallas_call(
        _scale_kernel,
        out_shape=jax.ShapeDtypeStruct(x_flat.shape, x_flat.dtype),
        grid_spec=pltpu.PrefetchScalarGridSpec(
            num_scalar_prefetch=0,
            grid=(N, n_t),
            in_specs=[
                pl.BlockSpec((1, c, tile_hw), lambda n, t: (n, 0, t)),
                pl.BlockSpec((1, 1, c), lambda n, t: (n, 0, 0)),
            ],
            out_specs=pl.BlockSpec((1, c, tile_hw), lambda n, t: (n, 0, t)),
        ),
        compiler_params=pltpu.CompilerParams(
            dimension_semantics=("parallel", "parallel"),
            vmem_limit_bytes=vmem_limit_bytes,
        ),
        cost_estimate=pl.CostEstimate(
            flops=int(N * c * hw),
            transcendentals=0,
            bytes_accessed=int(2 * N * c * hw * itemsize + 4 * N * c),
        ),
    )(x_flat, y)
    return out_flat


def channel_attention(x, w1, b1, w2, b2, *,
                      block_budget_bytes=None, vmem_limit_bytes=None):
    """x: (N, C, H, W). w1: (C_sq, C), b1: (C_sq, 1), w2: (C, C_sq), b2: (C, 1)."""
    N, C, H, W = x.shape
    C_sq = w1.shape[0]
    HW = H * W
    itemsize = x.dtype.itemsize

    auto_budget, auto_limit = _vmem_budgets()
    if block_budget_bytes is None:
        block_budget_bytes = auto_budget
    if vmem_limit_bytes is None:
        vmem_limit_bytes = auto_limit

    # Contiguous reshapes are free; no pad / slice round-trips through HBM.
    x_flat = x.reshape(N, C, HW)
    w1f = w1.astype(jnp.float32)
    w2f = w2.astype(jnp.float32)
    b1_row = b1.reshape(1, C_sq).astype(jnp.float32)
    b2_row = b2.reshape(1, C).astype(jnp.float32)

    param_bytes = 4 * (w1.size + b1.size + w2.size + b2.size)
    bytes_per_image = C * HW * itemsize

    Nb = _pick_batch_block(N, bytes_per_image, block_budget_bytes)
    if Nb == 0:
        # A single image overflows the VMEM budget: HW-tiled two-pass path.
        out_flat = _channel_attention_hw_tiled(
            x_flat, w1f, b1_row, w2f, b2_row,
            hw=HW, c=C, c_sq=C_sq, itemsize=itemsize,
            block_budget_bytes=block_budget_bytes,
            vmem_limit_bytes=vmem_limit_bytes, param_bytes=param_bytes)
        return out_flat.reshape(N, C, H, W)

    kernel = functools.partial(channel_attention_kernel, inv_hw=1.0 / HW)
    cost = pl.CostEstimate(
        flops=int(3 * N * C * HW + 4 * N * C * C_sq),
        transcendentals=int(N * C),
        bytes_accessed=int(2 * N * C * HW * itemsize + param_bytes),
    )

    out_flat = pl.pallas_call(
        kernel,
        out_shape=jax.ShapeDtypeStruct((N, C, HW), x.dtype),
        grid_spec=pltpu.PrefetchScalarGridSpec(
            num_scalar_prefetch=0,
            grid=(N // Nb,),
            in_specs=[
                pl.BlockSpec((Nb, C, HW), lambda n: (n, 0, 0)),
                pl.BlockSpec((C_sq, C), lambda n: (0, 0)),   # weights stay
                pl.BlockSpec((1, C_sq), lambda n: (0, 0)),   # resident: same
                pl.BlockSpec((C, C_sq), lambda n: (0, 0)),   # block each step
                pl.BlockSpec((1, C), lambda n: (0, 0)),
            ],
            out_specs=pl.BlockSpec((Nb, C, HW), lambda n: (n, 0, 0)),
        ),
        compiler_params=pltpu.CompilerParams(
            dimension_semantics=("parallel",),
            vmem_limit_bytes=vmem_limit_bytes,
        ),
        cost_estimate=cost,
    )(x_flat, w1f, b1_row, w2f, b2_row)

    return out_flat.reshape(N, C, H, W)


def reference_channel_attention(x, w1, b1, w2, b2):
    """Pure-JAX reference matching the PyTorch module semantics."""
    pooled = jnp.mean(x, axis=(2, 3))                          # (N, C)
    h = jnp.maximum(pooled @ w1.T + b1[:, 0], 0.0)             # (N, C_sq)
    y = jax.nn.sigmoid(h @ w2.T + b2[:, 0])                    # (N, C)
    return x * y[:, :, None, None]


def _run_case(key, N, C, H, W, squeeze_factor, **kw):
    C_sq = C // squeeze_factor
    kx, kw1, kb1, kw2, kb2 = jax.random.split(key, 5)
    x = jax.random.normal(kx, (N, C, H, W), dtype=jnp.float32)
    w1 = jax.random.normal(kw1, (C_sq, C), dtype=jnp.float32) * 0.1
    b1 = jax.random.normal(kb1, (C_sq, 1), dtype=jnp.float32) * 0.1
    w2 = jax.random.normal(kw2, (C, C_sq), dtype=jnp.float32) * 0.1
    b2 = jax.random.normal(kb2, (C, 1), dtype=jnp.float32) * 0.1

    out = jax.block_until_ready(channel_attention(x, w1, b1, w2, b2, **kw))
    ref = reference_channel_attention(x, w1, b1, w2, b2)
    assert out.shape == x.shape
    assert jnp.allclose(out, ref, atol=1e-5, rtol=1e-5), "mismatch vs reference"


if __name__ == "__main__":
    key = jax.random.PRNGKey(0)
    k1, k2, k3 = jax.random.split(key, 3)

    # Primary: num_feat=64, squeeze_factor=16 (as in the module), HW % 128 == 0.
    _run_case(k1, 2, 64, 16, 16, 16)

    # HW not a multiple of 128: full-extent last dim, no wrapper pad/slice.
    _run_case(k2, 2, 32, 10, 10, 16)

    # Force the HW-tiled fallback (oversized-image path) with a tiny budget.
    _run_case(k3, 2, 64, 16, 16, 16,
              block_budget_bytes=32 * 1024,
              vmem_limit_bytes=16 * 1024 * 1024)

    print("KERNEL_OK")
</pallas_src>

<mosaic_0001>
module attributes {stable_mosaic.version = 11 : i64} {
  func.func @channel_attention_kernel(%arg0: i32, %arg1: memref<1x64x256xf32, #tpu.memory_space<vmem>>, %arg2: memref<4x64xf32, #tpu.memory_space<vmem>>, %arg3: memref<1x4xf32, #tpu.memory_space<vmem>>, %arg4: memref<64x4xf32, #tpu.memory_space<vmem>>, %arg5: memref<1x64xf32, #tpu.memory_space<vmem>>, %arg6: memref<1x64x256xf32, #tpu.memory_space<vmem>>) attributes {dimension_semantics = [#tpu.dimension_semantics<parallel>], iteration_bounds = array<i64: 2>, scalar_prefetch = 0 : i64, scratch_operands = 0 : i64, tpu.core_type = #tpu.core_type<tc>, window_params = [{transform_indices = @transform_0, window_bounds = array<i64: 1, 64, 256>}, {pipeline_mode = #tpu.pipeline_mode<synchronous>, transform_indices = @transform_1, window_bounds = array<i64: 4, 64>}, {pipeline_mode = #tpu.pipeline_mode<synchronous>, transform_indices = @transform_2, window_bounds = array<i64: 1, 4>}, {pipeline_mode = #tpu.pipeline_mode<synchronous>, transform_indices = @transform_3, window_bounds = array<i64: 64, 4>}, {pipeline_mode = #tpu.pipeline_mode<synchronous>, transform_indices = @transform_4, window_bounds = array<i64: 1, 64>}, {transform_indices = @transform_5, window_bounds = array<i64: 1, 64, 256>}]} {
    %c0 = arith.constant 0 : index
    %c0_0 = arith.constant 0 : index
    %c0_1 = arith.constant 0 : index
    %0 = vector.load %arg1[%c0, %c0_0, %c0_1] : memref<1x64x256xf32, #tpu.memory_space<vmem>>, vector<1x64x256xf32>
    %cst = arith.constant dense<0.000000e+00> : vector<1x64xf32>
    %1 = vector.multi_reduction <add>, %0, %cst [2] : vector<1x64x256xf32> to vector<1x64xf32>
    %cst_2 = arith.constant 3.906250e-03 : f32
    %2 = vector.broadcast %cst_2 : f32 to vector<1x64xf32>
    %3 = arith.mulf %1, %2 : vector<1x64xf32>
    %c0_3 = arith.constant 0 : index
    %c0_4 = arith.constant 0 : index
    %4 = vector.load %arg2[%c0_3, %c0_4] : memref<4x64xf32, #tpu.memory_space<vmem>>, vector<4x64xf32>
    %5 = vector.shape_cast %4 : vector<4x64xf32> to vector<1x4x64xf32>
    %6 = vector.shape_cast %3 : vector<1x64xf32> to vector<1x1x64xf32>
    %7 = vector.broadcast %6 : vector<1x1x64xf32> to vector<1x4x64xf32>
    %8 = arith.mulf %5, %7 : vector<1x4x64xf32>
    %cst_5 = arith.constant dense<0.000000e+00> : vector<1x4xf32>
    %9 = vector.multi_reduction <add>, %8, %cst_5 [2] : vector<1x4x64xf32> to vector<1x4xf32>
    %c0_6 = arith.constant 0 : index
    %c0_7 = arith.constant 0 : index
    %10 = vector.load %arg3[%c0_6, %c0_7] : memref<1x4xf32, #tpu.memory_space<vmem>>, vector<1x4xf32>
    %11 = arith.addf %9, %10 : vector<1x4xf32>
    %cst_8 = arith.constant 0.000000e+00 : f32
    %12 = vector.broadcast %cst_8 : f32 to vector<1x4xf32>
    %13 = arith.maximumf %11, %12 : vector<1x4xf32>
    %c0_9 = arith.constant 0 : index
    %c0_10 = arith.constant 0 : index
    %14 = vector.load %arg4[%c0_9, %c0_10] : memref<64x4xf32, #tpu.memory_space<vmem>>, vector<64x4xf32>
    %15 = vector.shape_cast %14 : vector<64x4xf32> to vector<1x64x4xf32>
    %16 = vector.shape_cast %13 : vector<1x4xf32> to vector<1x1x4xf32>
    %17 = vector.broadcast %16 : vector<1x1x4xf32> to vector<1x64x4xf32>
    %18 = arith.mulf %15, %17 : vector<1x64x4xf32>
    %cst_11 = arith.constant dense<0.000000e+00> : vector<1x64xf32>
    %19 = vector.multi_reduction <add>, %18, %cst_11 [2] : vector<1x64x4xf32> to vector<1x64xf32>
    %c0_12 = arith.constant 0 : index
    %c0_13 = arith.constant 0 : index
    %20 = vector.load %arg5[%c0_12, %c0_13] : memref<1x64xf32, #tpu.memory_space<vmem>>, vector<1x64xf32>
    %21 = arith.addf %19, %20 : vector<1x64xf32>
    %22 = arith.negf %21 : vector<1x64xf32>
    %23 = math.exp %22 : vector<1x64xf32>
    %cst_14 = arith.constant 1.000000e+00 : f32
    %24 = vector.broadcast %cst_14 : f32 to vector<1x64xf32>
    %25 = arith.addf %24, %23 : vector<1x64xf32>
    %26 = arith.divf %24, %25 : vector<1x64xf32>
    %27 = vector.shape_cast %26 : vector<1x64xf32> to vector<1x64x1xf32>
    %28 = vector.broadcast %27 : vector<1x64x1xf32> to vector<1x64x256xf32>
    %29 = arith.mulf %0, %28 : vector<1x64x256xf32>
    %c0_15 = arith.constant 0 : index
    %c0_16 = arith.constant 0 : index
    %c0_17 = arith.constant 0 : index
    %30 = vector.load %arg6[%c0_15, %c0_16, %c0_17] : memref<1x64x256xf32, #tpu.memory_space<vmem>>, vector<1x64x256xf32>
    tpu.vector_store %arg6[%c0_15, %c0_16, %c0_17], %29 {strides = array<i32>} : memref<1x64x256xf32, #tpu.memory_space<vmem>>, vector<1x64x256xf32>,
    return
  }
  func.func @transform_0(%arg0: i32) -> (i32, i32, i32) {
    %c0_i32 = arith.constant 0 : i32
    %c0_i32_0 = arith.constant 0 : i32
    %c0_i32_1 = arith.constant 0 : i32
    return %arg0, %c0_i32, %c0_i32_0 : i32, i32, i32
  }
  func.func @transform_1(%arg0: i32) -> (i32, i32) {
    %c0_i32 = arith.constant 0 : i32
    %c0_i32_0 = arith.constant 0 : i32
    %c0_i32_1 = arith.constant 0 : i32
    return %c0_i32, %c0_i32_0 : i32, i32
  }
  func.func @transform_2(%arg0: i32) -> (i32, i32) {
    %c0_i32 = arith.constant 0 : i32
    %c0_i32_0 = arith.constant 0 : i32
    %c0_i32_1 = arith.constant 0 : i32
    return %c0_i32, %c0_i32_0 : i32, i32
  }
  func.func @transform_3(%arg0: i32) -> (i32, i32) {
    %c0_i32 = arith.constant 0 : i32
    %c0_i32_0 = arith.constant 0 : i32
    %c0_i32_1 = arith.constant 0 : i32
    return %c0_i32, %c0_i32_0 : i32, i32
  }
  func.func @transform_4(%arg0: i32) -> (i32, i32) {
    %c0_i32 = arith.constant 0 : i32
    %c0_i32_0 = arith.constant 0 : i32
    %c0_i32_1 = arith.constant 0 : i32
    return %c0_i32, %c0_i32_0 : i32, i32
  }
  func.func @transform_5(%arg0: i32) -> (i32, i32, i32) {
    %c0_i32 = arith.constant 0 : i32
    %c0_i32_0 = arith.constant 0 : i32
    %c0_i32_1 = arith.constant 0 : i32
    return %arg0, %c0_i32, %c0_i32_0 : i32, i32, i32
  }
}

</mosaic_0001>

<llo_original>
// kernel: tpu_custom_call.1
$region0: #{tpu_custom_call.1}
  #allocation0 [shape = 'u32[]', space=smem, size = 0x4, offset = 0x4, fixed_abs, tag = 'smem constant byte address 0x4 - core index']
  #allocation1 [shape = 'u32[72,128]{1,0:T(1,128)}', space=vmem, size = 0x9000, scoped, tag = 'internal scratch']
  %s0 = inlined_call_operand.hbm [shape: f32[2,64,256], index: 0, kind: input, shape index: {}]
  %s1 = inlined_call_operand.vmem [shape: f32[4,64], index: 1, kind: input, shape index: {}]
  %s2 = inlined_call_operand.vmem [shape: f32[1,4], index: 2, kind: input, shape index: {}]
  %s3 = inlined_call_operand.vmem [shape: f32[64,4], index: 3, kind: input, shape index: {}]
  %s4 = inlined_call_operand.vmem [shape: f32[1,64], index: 4, kind: input, shape index: {}]
  %s5 = inlined_call_operand.hbm [shape: f32[2,64,256], index: 5, kind: output, shape index: {}]
  %s6 = sld [smem:[#allocation0]]
  $region57: #{tpu_custom_call.1} parent=0
    _
  %s8 = ssub.s32 1, %s6
  %s9 = scalar_select 0, %s8, %s6
  $region1: #{tpu_custom_call.1} parent=0
    #allocation2 [shape = 'u8[131072]{0}', space=vmem, size = 0x20000, scoped, tag = 'input window, operand 0']
    #allocation3 [shape = 's32[2]{0}', space=sflag, size = 0x8, scoped, tag = 'scoped memory for tpu_custom_call.1']
    #allocation4 [shape = 's32[2]{0}', space=sflag, size = 0x8, scoped, tag = 'scoped memory for tpu_custom_call.1']
    #allocation5 [shape = 'u8[131072]{0}', space=vmem, size = 0x20000, scoped, tag = 'output window, operand 0']
    %10 = vsyncpa [#allocation3], 0
    %s11 = scalar_lea.sflag [#allocation3], 1
    %12 = vsyncpa %s11, 0
    %13 = vsyncpa [#allocation4], 0
    %s14 = scalar_lea.sflag [#allocation4], 1
    %15 = vsyncpa %s14, 0
    loop: start=0, step=1, limit=4
    $region2: #{tpu_custom_call.1} parent=1 // loop_pre_header
      _
    $region3: #{tpu_custom_call.1} parent=1 // loop_header
      %s17 = sphi 0, %s21
      %p18 = scmp.ge.s32.totalorder %s17, 4
      %s27 = sphi 0, %s29
      %s30 = sphi 0, %s27
      %s31 = sphi 0, %s30
      %s47 = sphi 0, %s31
      %s51 = sphi 0, %s51
      %s53 = sphi 0, %s51
      %s54 = sphi 0, %s53
      %s68 = sphi 0, %s54
      %s72 = sphi 0, %s72
      %s74 = sphi 0, %s72
      %s75 = sphi 0, %s74
      %s89 = sphi 0, %s75
      %s93 = sphi 0, %s93
      %s95 = sphi 0, %s93
      %s96 = sphi 0, %s95
      %s110 = sphi 0, %s96
      %s114 = sphi 0, %s114
      %s116 = sphi 0, %s114
      %s117 = sphi 0, %s116
      %s131 = sphi 0, %s117
      %s137 = sphi 0, %s139
      %s140 = sphi 0, %s137
      %s141 = sphi 0, %s140
      %s157 = sphi 0, %s141
    $region4: #{tpu_custom_call.1} parent=1 // loop_header_branch
      %20 = sbr.rel (%p18) target = $region8
    $region5: #{tpu_custom_call.1} parent=1 // loop_body
      %s22 = ssub.s32 %s17, 1
      %s23 = ssub.s32 %s17, 2
      %s24 = sadd.s32 %s17, 1
      %s25 = ssub.s32 %s17, %s24
      %p26 = scmp.eq.s32.totalorder %s25, 0
      %s28 = sadd.s32 %s27, 1
      %s29 = scalar_select %p26, %s27, %s28
      %p32 = pneg %p26
      %p33 = scmp.eq.s32.totalorder %s17, 1
      %p34 = por %p32, %p33
      %p35 = scmp.ne.s32.totalorder %s27, %s30
      %p36 = scmp.eq.s32.totalorder %s17, 0
      %p37 = por %p35, %p36
      %p38 = scmp.ne.s32.totalorder %s27, %s30
      %p39 = scmp.eq.s32.totalorder %s22, 1
      %p40 = por %p38, %p39
      %p41 = scmp.ne.s32.totalorder %s30, %s31
      %p42 = scmp.eq.s32.totalorder %s22, 0
      %p43 = por %p41, %p42
      %p44 = scmp.ne.s32.totalorder %s30, %s31
      %p45 = scmp.eq.s32.totalorder %s23, 1
      %p46 = por %p44, %p45
      %p48 = scmp.ne.s32.totalorder %s31, %s47
      %p49 = scmp.eq.s32.totalorder %s23, 0
      %p50 = por %p48, %p49
      %s52 = sadd.s32 %s51, 1
      %p55 = scmp.eq.s32.totalorder %s17, 1
      %p56 = scmp.ne.s32.totalorder %s51, %s53
      %p57 = scmp.eq.s32.totalorder %s17, 0
      %p58 = por %p56, %p57
      %p59 = scmp.ne.s32.totalorder %s51, %s53
      %p60 = scmp.eq.s32.totalorder %s22, 1
      %p61 = por %p59, %p60
      %p62 = scmp.ne.s32.totalorder %s53, %s54
      %p63 = scmp.eq.s32.totalorder %s22, 0
      %p64 = por %p62, %p63
      %p65 = scmp.ne.s32.totalorder %s53, %s54
      %p66 = scmp.eq.s32.totalorder %s23, 1
      %p67 = por %p65, %p66
      %p69 = scmp.ne.s32.totalorder %s54, %s68
      %p70 = scmp.eq.s32.totalorder %s23, 0
      %p71 = por %p69, %p70
      %s73 = sadd.s32 %s72, 1
      %p76 = scmp.eq.s32.totalorder %s17, 1
      %p77 = scmp.ne.s32.totalorder %s72, %s74
      %p78 = scmp.eq.s32.totalorder %s17, 0
      %p79 = por %p77, %p78
      %p80 = scmp.ne.s32.totalorder %s72, %s74
      %p81 = scmp.eq.s32.totalorder %s22, 1
      %p82 = por %p80, %p81
      %p83 = scmp.ne.s32.totalorder %s74, %s75
      %p84 = scmp.eq.s32.totalorder %s22, 0
      %p85 = por %p83, %p84
      %p86 = scmp.ne.s32.totalorder %s74, %s75
      %p87 = scmp.eq.s32.totalorder %s23, 1
      %p88 = por %p86, %p87
      %p90 = scmp.ne.s32.totalorder %s75, %s89
      %p91 = scmp.eq.s32.totalorder %s23, 0
      %p92 = por %p90, %p91
      %s94 = sadd.s32 %s93, 1
      %p97 = scmp.eq.s32.totalorder %s17, 1
      %p98 = scmp.ne.s32.totalorder %s93, %s95
      %p99 = scmp.eq.s32.totalorder %s17, 0
      %p100 = por %p98, %p99
      %p101 = scmp.ne.s32.totalorder %s93, %s95
      %p102 = scmp.eq.s32.totalorder %s22, 1
      %p103 = por %p101, %p102
      %p104 = scmp.ne.s32.totalorder %s95, %s96
      %p105 = scmp.eq.s32.totalorder %s22, 0
      %p106 = por %p104, %p105
      %p107 = scmp.ne.s32.totalorder %s95, %s96
      %p108 = scmp.eq.s32.totalorder %s23, 1
      %p109 = por %p107, %p108
      %p111 = scmp.ne.s32.totalorder %s96, %s110
      %p112 = scmp.eq.s32.totalorder %s23, 0
      %p113 = por %p111, %p112
      %s115 = sadd.s32 %s114, 1
      %p118 = scmp.eq.s32.totalorder %s17, 1
      %p119 = scmp.ne.s32.totalorder %s114, %s116
      %p120 = scmp.eq.s32.totalorder %s17, 0
      %p121 = por %p119, %p120
      %p122 = scmp.ne.s32.totalorder %s114, %s116
      %p123 = scmp.eq.s32.totalorder %s22, 1
      %p124 = por %p122, %p123
      %p125 = scmp.ne.s32.totalorder %s116, %s117
      %p126 = scmp.eq.s32.totalorder %s22, 0
      %p127 = por %p125, %p126
      %p128 = scmp.ne.s32.totalorder %s116, %s117
      %p129 = scmp.eq.s32.totalorder %s23, 1
      %p130 = por %p128, %p129
      %p132 = scmp.ne.s32.totalorder %s117, %s131
      %p133 = scmp.eq.s32.totalorder %s23, 0
      %p134 = por %p132, %p133
      %s135 = ssub.s32 %s17, %s24
      %p136 = scmp.eq.s32.totalorder %s135, 0
      %s138 = sadd.s32 %s137, 1
      %s139 = scalar_select %p136, %s137, %s138
      %p142 = pneg %p136
      %p143 = scmp.eq.s32.totalorder %s17, 1
      %p144 = por %p142, %p143
      %p145 = scmp.ne.s32.totalorder %s137, %s140
      %p146 = scmp.eq.s32.totalorder %s17, 0
      %p147 = por %p145, %p146
      %p148 = scmp.ne.s32.totalorder %s137, %s140
      %p149 = scmp.eq.s32.totalorder %s22, 1
      %p150 = por %p148, %p149
      %p151 = scmp.ne.s32.totalorder %s140, %s141
      %p152 = scmp.eq.s32.totalorder %s22, 0
      %p153 = por %p151, %p152
      %p154 = scmp.ne.s32.totalorder %s140, %s141
      %p155 = scmp.eq.s32.totalorder %s23, 1
      %p156 = por %p154, %p155
      %p158 = scmp.ne.s32.totalorder %s141, %s157
      %p159 = scmp.eq.s32.totalorder %s23, 0
      %p160 = por %p158, %p159
      %p161 = scmp.le.s32.totalorder 1, %s17
      %p162 = scmp.lt.s32.totalorder %s17, 3
      %p163 = pnand %p161, %p162
      %p164 = pneg %p163
      // Predicated region
      $region9: #{tpu_custom_call.1} parent=5 // pred_check
        _
      $region10: #{tpu_custom_call.1} parent=5 // pred_check_branch
        %166 = sbr.rel (%p163) target = $region12
      $region11: #{tpu_custom_call.1} parent=5 // pred_region
        %s167 = ssub.s32 %s17, 1
        // Predicated region
        $region13: #{tpu_custom_call.1} parent=11 // pred_check
          %p168 = pneg %p64
        $region14: #{tpu_custom_call.1} parent=11 // pred_check_branch
          %170 = sbr.rel (%p168) target = $region16
        $region15: #{tpu_custom_call.1} parent=11 // pred_region
          _
        $region16: #{tpu_custom_call.1} parent=11 // pred_fallthru
          _
        // Predicated region
        $region17: #{tpu_custom_call.1} parent=11 // pred_check
          %p171 = pneg %p85
        $region18: #{tpu_custom_call.1} parent=11 // pred_check_branch
          %173 = sbr.rel (%p171) target = $region20
        $region19: #{tpu_custom_call.1} parent=11 // pred_region
          _
        $region20: #{tpu_custom_call.1} parent=11 // pred_fallthru
          _
        // Predicated region
        $region21: #{tpu_custom_call.1} parent=11 // pred_check
          %p174 = pneg %p106
        $region22: #{tpu_custom_call.1} parent=11 // pred_check_branch
          %176 = sbr.rel (%p174) target = $region24
        $region23: #{tpu_custom_call.1} parent=11 // pred_region
          _
        $region24: #{tpu_custom_call.1} parent=11 // pred_fallthru
          _
        // Predicated region
        $region25: #{tpu_custom_call.1} parent=11 // pred_check
          %p177 = pneg %p127
        $region26: #{tpu_custom_call.1} parent=11 // pred_check_branch
          %179 = sbr.rel (%p177) target = $region28
        $region27: #{tpu_custom_call.1} parent=11 // pred_region
          _
        $region28: #{tpu_custom_call.1} parent=11 // pred_fallthru
          _
      $region12: #{tpu_custom_call.1} parent=5 // pred_fallthru
        _
      %p180 = scmp.lt.s32.totalorder %s17, 2
      // Predicated region
      $region29: #{tpu_custom_call.1} parent=5 // pred_check
        %p181 = pneg %p180
      $region30: #{tpu_custom_call.1} parent=5 // pred_check_branch
        %183 = sbr.rel (%p181) target = $region32
      $region31: #{tpu_custom_call.1} parent=5 // pred_region
        // Predicated region
        $region33: #{tpu_custom_call.1} parent=31 // pred_check
          %p184 = pneg %p37
        $region34: #{tpu_custom_call.1} parent=31 // pred_check_branch
          %186 = sbr.rel (%p184) target = $region36
        $region35: #{tpu_custom_call.1} parent=31 // pred_region
          %s187 = sand.u32 %s27, 1
          %s188 = scalar_lea.sflag [#allocation3], %s187
          %s189 = sand.u32 %s27, 1
          %s190 = smul.addr %s189, 128
          %s191 = scalar_lea.vmem [#allocation2], %s190
          %193 = vsyncadd %s188, 0
          %s194 = smul.addr %s17, 16
          %s195 = smul.addr %s194, 8
          %s196 = scalar_lea.hbm %s0, %s195
          %s197 = sshll.u32 %s196, 4
          %s198 = int_to_ptr.hbm [resolvable:$true] %s197
          %s199 = sshll.u32 %s191, 4
          %s200 = int_to_ptr.vmem [resolvable:$true] %s199
          %205 = dma.hbm_to_vmem [thread:$0]  %s198, 2048, %s200, %s188, 256, 256, 16
        $region36: #{tpu_custom_call.1} parent=31 // pred_fallthru
          _
      $region32: #{tpu_custom_call.1} parent=5 // pred_fallthru
        _
      %p206 = scmp.le.s32.totalorder 1, %s17
      %p207 = scmp.lt.s32.totalorder %s17, 3
      %p208 = pnand %p206, %p207
      %p209 = pneg %p208
      // Predicated region
      $region37: #{tpu_custom_call.1} parent=5 // pred_check
        _
      $region38: #{tpu_custom_call.1} parent=5 // pred_check_branch
        %211 = sbr.rel (%p208) target = $region40
      $region39: #{tpu_custom_call.1} parent=5 // pred_region
        %s212 = ssub.s32 %s17, 1
        %s213 = sand.u32 %s30, 1
        %s214 = scalar_lea.sflag [#allocation3], %s213
        %s215 = sand.u32 %s30, 1
        %s216 = smul.addr %s215, 128
        %s217 = scalar_lea.vmem [#allocation2], %s216
        // Predicated region
        $region41: #{tpu_custom_call.1} parent=39 // pred_check
          %p218 = pneg %p43
        $region42: #{tpu_custom_call.1} parent=39 // pred_check_branch
          %220 = sbr.rel (%p218) target = $region44
        $region43: #{tpu_custom_call.1} parent=39 // pred_region
          %222 = dma.done %s214, 2048
        $region44: #{tpu_custom_call.1} parent=39 // pred_fallthru
          _
        %s223 = sand.u32 %s30, 1
        %s224 = scalar_lea.sflag [#allocation3], %s223
        %s225 = sand.u32 %s30, 1
        %s226 = smul.addr %s225, 128
        %s227 = scalar_lea.vmem [#allocation2], %s226
        %p228 = pneg %p43
        %p229 = pneg %p40
        %p230 = pneg %p64
        %p231 = pneg %p61
        %p232 = pneg %p85
        %p233 = pneg %p82
        %p234 = pneg %p106
        %p235 = pneg %p103
        %p236 = pneg %p127
        %p237 = pneg %p124
        %p238 = pneg %p153
        %p239 = pneg %p150
        %s240 = sand.u32 %s140, 1
        %s241 = scalar_lea.sflag [#allocation4], %s240
        %s242 = sand.u32 %s140, 1
        %s243 = smul.addr %s242, 128
        %s244 = scalar_lea.vmem [#allocation5], %s243
        %v245 = vld [vmem:[%s217] sm:$0xff]
        %v246 = vld [vmem:[%s217 + $0x8] sm:$0xff]
        %v247 = vld [vmem:[%s217 + $0x10] sm:$0xff]
        %v248 = vld [vmem:[%s217 + $0x18] sm:$0xff]
        %v249 = vld [vmem:[%s217 + $0x20] sm:$0xff]
        %v250 = vld [vmem:[%s217 + $0x28] sm:$0xff]
        %v251 = vld [vmem:[%s217 + $0x30] sm:$0xff]
        %v252 = vld [vmem:[%s217 + $0x38] sm:$0xff]
        %v253 = vld [vmem:[%s217 + $0x40] sm:$0xff]
        %v254 = vld [vmem:[%s217 + $0x48] sm:$0xff]
        %v255 = vld [vmem:[%s217 + $0x50] sm:$0xff]
        %v256 = vld [vmem:[%s217 + $0x58] sm:$0xff]
        %v257 = vld [vmem:[%s217 + $0x60] sm:$0xff]
        %v258 = vld [vmem:[%s217 + $0x68] sm:$0xff]
        %v259 = vld [vmem:[%s217 + $0x70] sm:$0xff]
        %v260 = vld [vmem:[%s217 + $0x78] sm:$0xff]
        %v261 = vadd.f32 %v245, %v246
        %262 = vadd.xlane.f32.xlu0 %v261
        %v263 = vpop.xlane.xlu0 %262
        %v264 = vadd.f32 %v247, %v248
        %265 = vadd.xlane.f32.xlu0 %v264
        %v266 = vpop.xlane.xlu0 %265
        %v267 = vadd.f32 %v249, %v250
        %268 = vadd.xlane.f32.xlu0 %v267
        %v269 = vpop.xlane.xlu0 %268
        %v270 = vadd.f32 %v251, %v252
        %271 = vadd.xlane.f32.xlu0 %v270
        %v272 = vpop.xlane.xlu0 %271
        %v273 = vadd.f32 %v253, %v254
        %274 = vadd.xlane.f32.xlu0 %v273
        %v275 = vpop.xlane.xlu0 %274
        %v276 = vadd.f32 %v255, %v256
        %277 = vadd.xlane.f32.xlu0 %v276
        %v278 = vpop.xlane.xlu0 %277
        %v279 = vadd.f32 %v257, %v258
        %280 = vadd.xlane.f32.xlu0 %v279
        %v281 = vpop.xlane.xlu0 %280
        %v282 = vadd.f32 %v259, %v260
        %283 = vadd.xlane.f32.xlu0 %v282
        %v284 = vpop.xlane.xlu0 %283
        %v285 = vmul.f32 %v263, 0.00390625
        %v286 = vmul.f32 %v266, 0.00390625
        %v287 = vmul.f32 %v269, 0.00390625
        %v288 = vmul.f32 %v272, 0.00390625
        %v289 = vmul.f32 %v275, 0.00390625
        %v290 = vmul.f32 %v278, 0.00390625
        %v291 = vmul.f32 %v281, 0.00390625
        %v292 = vmul.f32 %v284, 0.00390625
        %v293 = vld [vmem:[%s1] sm:$0xf]
        %v302 = vlaneseq
        %v303 = vand.u32 %v302, 127
        %v304 = vperm.slane %v285, %v303
        %v305 = vadd.s32 %v303, 4294967288
        %v306 = vperm.slane %v286, %v305
        %vm307 = vcmask 130112
        %v308 = vsel %vm307, %v306, %v304
        %v309 = vadd.s32 %v303, 4294967280
        %v310 = vperm.slane %v287, %v309
        %vm311 = vcmask 195712
        %v312 = vsel %vm311, %v310, %v308
        %v313 = vadd.s32 %v303, 4294967272
        %v314 = vperm.slane %v288, %v313
        %vm315 = vcmask 261312
        %v316 = vsel %vm315, %v314, %v312
        %v317 = vadd.s32 %v303, 4294967264
        %v318 = vperm.slane %v289, %v317
        %vm319 = vcmask 326912
        %v320 = vsel %vm319, %v318, %v316
        %v321 = vadd.s32 %v303, 4294967256
        %v322 = vperm.slane %v290, %v321
        %vm323 = vcmask 392512
        %v324 = vsel %vm323, %v322, %v320
        %v325 = vadd.s32 %v303, 4294967248
        %v326 = vperm.slane %v291, %v325
        %vm327 = vcmask 458112
        %v328 = vsel %vm327, %v326, %v324
        %v329 = vadd.s32 %v303, 4294967240
        %v330 = vperm.slane %v292, %v329
        %vm331 = vcmask 523712
        %v332 = vsel %vm331, %v330, %v328
        %vm333 = vcmask 1042434
        %v334 = vsel %vm333, %v332, %v332
        %vm335 = vcmask 1043459
        %v336 = vsel %vm335, %v332, %v334
        %v338 = vmul.f32 %v293, %v336
        %vm339 = vcmask 519168
        %v340 = vsel %vm339, %v338, 0.0
        %341 = vadd.xlane.f32.xlu0 %v340
        %v342 = vpop.xlane.xlu0 %341
        %v343 = vld [vmem:[%s2] sm:$0x1]
        %v345 = vperm.slane %v343, 0
        %v346 = vlaneseq
        %v347 = vshrl.u32 %v346, 7
        %349 = vset.pattern.permute.xlu0 %v347
        %350 = vperm.xlu0 %349, %v345
        %v351 = vpop.permute.xlu0 %350
        %v353 = vadd.f32 %v342, %v351
        %v354 = vmax.f32 %v353, 0.0
        %v355 = vld [vmem:[%s3] sm:$0xff]
        %v356 = vld [vmem:[%s3 + $0x8] sm:$0xff]
        %v357 = vld [vmem:[%s3 + $0x10] sm:$0xff]
        %v358 = vld [vmem:[%s3 + $0x18] sm:$0xff]
        %v359 = vld [vmem:[%s3 + $0x20] sm:$0xff]
        %v360 = vld [vmem:[%s3 + $0x28] sm:$0xff]
        %v361 = vld [vmem:[%s3 + $0x30] sm:$0xff]
        %v362 = vld [vmem:[%s3 + $0x38] sm:$0xff]
        %364 = vset.pattern.permute.xlu0 0
        %365 = vperm.xlu0 %364, %v354
        %v366 = vpop.permute.xlu0 %365
        %v367 = vperm.slane %v366, %v303
        %v368 = vsel %vm333, %v367, %v367
        %v369 = vsel %vm335, %v367, %v368
        %vm370 = vcmask 1044484
        %v371 = vsel %vm370, %v367, %v369
        %vm372 = vcmask 1045509
        %v373 = vsel %vm372, %v367, %v371
        %vm374 = vcmask 1046534
        %v375 = vsel %vm374, %v367, %v373
        %vm376 = vcmask 1047559
        %v377 = vsel %vm376, %v367, %v375
        %v379 = vmul.f32 %v355, %v377
        %v380 = vmul.f32 %v356, %v377
        %v381 = vmul.f32 %v357, %v377
        %v382 = vmul.f32 %v358, %v377
        %v383 = vmul.f32 %v359, %v377
        %v384 = vmul.f32 %v360, %v377
        %v385 = vmul.f32 %v361, %v377
        %v386 = vmul.f32 %v362, %v377
        %vm387 = vcmask 31744
        %v388 = vsel %vm387, %v379, 0.0
        %389 = vadd.xlane.f32.xlu0 %v388
        %v390 = vpop.xlane.xlu0 %389
        %v391 = vsel %vm387, %v380, 0.0
        %392 = vadd.xlane.f32.xlu0 %v391
        %v393 = vpop.xlane.xlu0 %392
        %v394 = vsel %vm387, %v381, 0.0
        %395 = vadd.xlane.f32.xlu0 %v394
        %v396 = vpop.xlane.xlu0 %395
        %v397 = vsel %vm387, %v382, 0.0
        %398 = vadd.xlane.f32.xlu0 %v397
        %v399 = vpop.xlane.xlu0 %398
        %v400 = vsel %vm387, %v383, 0.0
        %401 = vadd.xlane.f32.xlu0 %v400
        %v402 = vpop.xlane.xlu0 %401
        %v403 = vsel %vm387, %v384, 0.0
        %404 = vadd.xlane.f32.xlu0 %v403
        %v405 = vpop.xlane.xlu0 %404
        %v406 = vsel %vm387, %v385, 0.0
        %407 = vadd.xlane.f32.xlu0 %v406
        %v408 = vpop.xlane.xlu0 %407
        %v409 = vsel %vm387, %v386, 0.0
        %410 = vadd.xlane.f32.xlu0 %v409
        %v411 = vpop.xlane.xlu0 %410
        %v412 = vld [vmem:[%s4] sm:$0x1]
        %v414 = vperm.slane %v412, 0
        %v415 = vlaneseq
        %v416 = vshrl.u32 %v415, 7
        %418 = vset.pattern.permute.xlu0 %v416
        %419 = vperm.xlu0 %418, %v414
        %v420 = vpop.permute.xlu0 %419
        %v421 = vlaneseq
        %v422 = vshrl.u32 %v421, 7
        %v423 = vadd.s32 %v422, 8
        %424 = vset.pattern.permute.xlu0 %v423
        %425 = vperm.xlu0 %424, %v414
        %v426 = vpop.permute.xlu0 %425
        %v427 = vlaneseq
        %v428 = vshrl.u32 %v427, 7
        %v429 = vadd.s32 %v428, 16
        %430 = vset.pattern.permute.xlu0 %v429
        %431 = vperm.xlu0 %430, %v414
        %v432 = vpop.permute.xlu0 %431
        %v433 = vlaneseq
        %v434 = vshrl.u32 %v433, 7
        %v435 = vadd.s32 %v434, 24
        %436 = vset.pattern.permute.xlu0 %v435
        %437 = vperm.xlu0 %436, %v414
        %v438 = vpop.permute.xlu0 %437
        %v439 = vlaneseq
        %v440 = vshrl.u32 %v439, 7
        %v441 = vadd.s32 %v440, 32
        %442 = vset.pattern.permute.xlu0 %v441
        %443 = vperm.xlu0 %442, %v414
        %v444 = vpop.permute.xlu0 %443
        %v445 = vlaneseq
        %v446 = vshrl.u32 %v445, 7
        %v447 = vadd.s32 %v446, 40
        %448 = vset.pattern.permute.xlu0 %v447
        %449 = vperm.xlu0 %448, %v414
        %v450 = vpop.permute.xlu0 %449
        %v451 = vlaneseq
        %v452 = vshrl.u32 %v451, 7
        %v453 = vadd.s32 %v452, 48
        %454 = vset.pattern.permute.xlu0 %v453
        %455 = vperm.xlu0 %454, %v414
        %v456 = vpop.permute.xlu0 %455
        %v457 = vlaneseq
        %v458 = vshrl.u32 %v457, 7
        %v459 = vadd.s32 %v458, 56
        %460 = vset.pattern.permute.xlu0 %v459
        %461 = vperm.xlu0 %460, %v414
        %v462 = vpop.permute.xlu0 %461
        %v471 = vadd.f32 %v390, %v420
        %v472 = vadd.f32 %v393, %v426
        %v473 = vadd.f32 %v396, %v432
        %v474 = vadd.f32 %v399, %v438
        %v475 = vadd.f32 %v402, %v444
        %v476 = vadd.f32 %v405, %v450
        %v477 = vadd.f32 %v408, %v456
        %v478 = vadd.f32 %v411, %v462
        %v479 = vxor.u32 %v471, 2147483648
        %v480 = vxor.u32 %v472, 2147483648
        %v481 = vxor.u32 %v473, 2147483648
        %v482 = vxor.u32 %v474, 2147483648
        %v483 = vxor.u32 %v475, 2147483648
        %v484 = vxor.u32 %v476, 2147483648
        %v485 = vxor.u32 %v477, 2147483648
        %v486 = vxor.u32 %v478, 2147483648
        %v487 = vmul.f32 %v479, 1.442695
        %v488 = vpow.pop %v487
        %v489 = vmul.f32 %v480, 1.442695
        %v490 = vpow.pop %v489
        %v491 = vmul.f32 %v481, 1.442695
        %v492 = vpow.pop %v491
        %v493 = vmul.f32 %v482, 1.442695
        %v494 = vpow.pop %v493
        %v495 = vmul.f32 %v483, 1.442695
        %v496 = vpow.pop %v495
        %v497 = vmul.f32 %v484, 1.442695
        %v498 = vpow.pop %v497
        %v499 = vmul.f32 %v485, 1.442695
        %v500 = vpow.pop %v499
        %v501 = vmul.f32 %v486, 1.442695
        %v502 = vpow.pop %v501
        %v503 = vadd.f32 %v488, 1.0
        %v504 = vadd.f32 %v490, 1.0
        %v505 = vadd.f32 %v492, 1.0
        %v506 = vadd.f32 %v494, 1.0
        %v507 = vadd.f32 %v496, 1.0
        %v508 = vadd.f32 %v498, 1.0
        %v509 = vadd.f32 %v500, 1.0
        %v510 = vadd.f32 %v502, 1.0
        %v511 = vrcp.pop %v503
        %v512 = vmul.f32 %v503, %v511
        %v513 = vsub.f32 1.0, %v512
        %v514 = vmul.f32 %v511, %v513
        %v515 = vadd.f32 %v511, %v514
        %vm516 = vweird.f32 %v503
        %vm517 = vweird.f32 %v511
        %vm518 = vmor %vm516, %vm517
        %v519 = vsel %vm518, %v511, %v515
        %v520 = vand.u32 2147483647, %v503
        %vm521 = vcmp.eq.f32.partialorder %v520, 8.507059e+37
        %v522 = vand.u32 %v503, 2147483648
        %v523 = vor.u32 1.1754944e-38, %v522
        %v524 = vsel %vm521, %v523, %v519
        %v525 = vmul.f32 1.0, %v524
        %v526 = vrcp.pop %v504
        %v527 = vmul.f32 %v504, %v526
        %v528 = vsub.f32 1.0, %v527
        %v529 = vmul.f32 %v526, %v528
        %v530 = vadd.f32 %v526, %v529
        %vm531 = vweird.f32 %v504
        %vm532 = vweird.f32 %v526
        %vm533 = vmor %vm531, %vm532
        %v534 = vsel %vm533, %v526, %v530
        %v535 = vand.u32 2147483647, %v504
        %vm536 = vcmp.eq.f32.partialorder %v535, 8.507059e+37
        %v537 = vand.u32 %v504, 2147483648
        %v538 = vor.u32 1.1754944e-38, %v537
        %v539 = vsel %vm536, %v538, %v534
        %v540 = vmul.f32 1.0, %v539
        %v541 = vrcp.pop %v505
        %v542 = vmul.f32 %v505, %v541
        %v543 = vsub.f32 1.0, %v542
        %v544 = vmul.f32 %v541, %v543
        %v545 = vadd.f32 %v541, %v544
        %vm546 = vweird.f32 %v505
        %vm547 = vweird.f32 %v541
        %vm548 = vmor %vm546, %vm547
        %v549 = vsel %vm548, %v541, %v545
        %v550 = vand.u32 2147483647, %v505
        %vm551 = vcmp.eq.f32.partialorder %v550, 8.507059e+37
        %v552 = vand.u32 %v505, 2147483648
        %v553 = vor.u32 1.1754944e-38, %v552
        %v554 = vsel %vm551, %v553, %v549
        %v555 = vmul.f32 1.0, %v554
        %v556 = vrcp.pop %v506
        %v557 = vmul.f32 %v506, %v556
        %v558 = vsub.f32 1.0, %v557
        %v559 = vmul.f32 %v556, %v558
        %v560 = vadd.f32 %v556, %v559
        %vm561 = vweird.f32 %v506
        %vm562 = vweird.f32 %v556
        %vm563 = vmor %vm561, %vm562
        %v564 = vsel %vm563, %v556, %v560
        %v565 = vand.u32 2147483647, %v506
        %vm566 = vcmp.eq.f32.partialorder %v565, 8.507059e+37
        %v567 = vand.u32 %v506, 2147483648
        %v568 = vor.u32 1.1754944e-38, %v567
        %v569 = vsel %vm566, %v568, %v564
        %v570 = vmul.f32 1.0, %v569
        %v571 = vrcp.pop %v507
        %v572 = vmul.f32 %v507, %v571
        %v573 = vsub.f32 1.0, %v572
        %v574 = vmul.f32 %v571, %v573
        %v575 = vadd.f32 %v571, %v574
        %vm576 = vweird.f32 %v507
        %vm577 = vweird.f32 %v571
        %vm578 = vmor %vm576, %vm577
        %v579 = vsel %vm578, %v571, %v575
        %v580 = vand.u32 2147483647, %v507
        %vm581 = vcmp.eq.f32.partialorder %v580, 8.507059e+37
        %v582 = vand.u32 %v507, 2147483648
        %v583 = vor.u32 1.1754944e-38, %v582
        %v584 = vsel %vm581, %v583, %v579
        %v585 = vmul.f32 1.0, %v584
        %v586 = vrcp.pop %v508
        %v587 = vmul.f32 %v508, %v586
        %v588 = vsub.f32 1.0, %v587
        %v589 = vmul.f32 %v586, %v588
        %v590 = vadd.f32 %v586, %v589
        %vm591 = vweird.f32 %v508
        %vm592 = vweird.f32 %v586
        %vm593 = vmor %vm591, %vm592
        %v594 = vsel %vm593, %v586, %v590
        %v595 = vand.u32 2147483647, %v508
        %vm596 = vcmp.eq.f32.partialorder %v595, 8.507059e+37
        %v597 = vand.u32 %v508, 2147483648
        %v598 = vor.u32 1.1754944e-38, %v597
        %v599 = vsel %vm596, %v598, %v594
        %v600 = vmul.f32 1.0, %v599
        %v601 = vrcp.pop %v509
        %v602 = vmul.f32 %v509, %v601
        %v603 = vsub.f32 1.0, %v602
        %v604 = vmul.f32 %v601, %v603
        %v605 = vadd.f32 %v601, %v604
        %vm606 = vweird.f32 %v509
        %vm607 = vweird.f32 %v601
        %vm608 = vmor %vm606, %vm607
        %v609 = vsel %vm608, %v601, %v605
        %v610 = vand.u32 2147483647, %v509
        %vm611 = vcmp.eq.f32.partialorder %v610, 8.507059e+37
        %v612 = vand.u32 %v509, 2147483648
        %v613 = vor.u32 1.1754944e-38, %v612
        %v614 = vsel %vm611, %v613, %v609
        %v615 = vmul.f32 1.0, %v614
        %v616 = vrcp.pop %v510
        %v617 = vmul.f32 %v510, %v616
        %v618 = vsub.f32 1.0, %v617
        %v619 = vmul.f32 %v616, %v618
        %v620 = vadd.f32 %v616, %v619
        %vm621 = vweird.f32 %v510
        %vm622 = vweird.f32 %v616
        %vm623 = vmor %vm621, %vm622
        %v624 = vsel %vm623, %v616, %v620
        %v625 = vand.u32 2147483647, %v510
        %vm626 = vcmp.eq.f32.partialorder %v625, 8.507059e+37
        %v627 = vand.u32 %v510, 2147483648
        %v628 = vor.u32 1.1754944e-38, %v627
        %v629 = vsel %vm626, %v628, %v624
        %v630 = vmul.f32 1.0, %v629
        %632 = vset.pattern.permute.xlu0 0
        %633 = vperm.xlu0 %632, %v525
        %v634 = vpop.permute.xlu0 %633
        %637 = vset.pattern.permute.xlu0 0
        %638 = vperm.xlu0 %637, %v540
        %v639 = vpop.permute.xlu0 %638
        %642 = vset.pattern.permute.xlu0 0
        %643 = vperm.xlu0 %642, %v555
        %v644 = vpop.permute.xlu0 %643
        %647 = vset.pattern.permute.xlu0 0
        %648 = vperm.xlu0 %647, %v570
        %v649 = vpop.permute.xlu0 %648
        %652 = vset.pattern.permute.xlu0 0
        %653 = vperm.xlu0 %652, %v585
        %v654 = vpop.permute.xlu0 %653
        %657 = vset.pattern.permute.xlu0 0
        %658 = vperm.xlu0 %657, %v600
        %v659 = vpop.permute.xlu0 %658
        %662 = vset.pattern.permute.xlu0 0
        %663 = vperm.xlu0 %662, %v615
        %v664 = vpop.permute.xlu0 %663
        %667 = vset.pattern.permute.xlu0 0
        %668 = vperm.xlu0 %667, %v630
        %v669 = vpop.permute.xlu0 %668
        %v671 = vmul.f32 %v245, %v634
        %v672 = vmul.f32 %v246, %v634
        %v673 = vmul.f32 %v247, %v639
        %v674 = vmul.f32 %v248, %v639
        %v675 = vmul.f32 %v249, %v644
        %v676 = vmul.f32 %v250, %v644
        %v677 = vmul.f32 %v251, %v649
        %v678 = vmul.f32 %v252, %v649
        %v679 = vmul.f32 %v253, %v654
        %v680 = vmul.f32 %v254, %v654
        %v681 = vmul.f32 %v255, %v659
        %v682 = vmul.f32 %v256, %v659
        %v683 = vmul.f32 %v257, %v664
        %v684 = vmul.f32 %v258, %v664
        %v685 = vmul.f32 %v259, %v669
        %v686 = vmul.f32 %v260, %v669
        %687 = vst [vmem:[%s244] sm:$0xff] %v671
        %688 = vst [vmem:[%s244 + $0x8] sm:$0xff] %v672
        %689 = vst [vmem:[%s244 + $0x10] sm:$0xff] %v673
        %690 = vst [vmem:[%s244 + $0x18] sm:$0xff] %v674
        %691 = vst [vmem:[%s244 + $0x20] sm:$0xff] %v675
        %692 = vst [vmem:[%s244 + $0x28] sm:$0xff] %v676
        %693 = vst [vmem:[%s244 + $0x30] sm:$0xff] %v677
        %694 = vst [vmem:[%s244 + $0x38] sm:$0xff] %v678
        %695 = vst [vmem:[%s244 + $0x40] sm:$0xff] %v679
        %696 = vst [vmem:[%s244 + $0x48] sm:$0xff] %v680
        %697 = vst [vmem:[%s244 + $0x50] sm:$0xff] %v681
        %698 = vst [vmem:[%s244 + $0x58] sm:$0xff] %v682
        %699 = vst [vmem:[%s244 + $0x60] sm:$0xff] %v683
        %700 = vst [vmem:[%s244 + $0x68] sm:$0xff] %v684
        %701 = vst [vmem:[%s244 + $0x70] sm:$0xff] %v685
        %702 = vst [vmem:[%s244 + $0x78] sm:$0xff] %v686
        %s703 = sand.u32 %s140, 1
        %s704 = scalar_lea.sflag [#allocation4], %s703
        %s705 = sand.u32 %s140, 1
        %s706 = smul.addr %s705, 128
        %s707 = scalar_lea.vmem [#allocation5], %s706
        // Predicated region
        $region45: #{tpu_custom_call.1} parent=39 // pred_check
          %p708 = pneg %p150
        $region46: #{tpu_custom_call.1} parent=39 // pred_check_branch
          %710 = sbr.rel (%p708) target = $region48
        $region47: #{tpu_custom_call.1} parent=39 // pred_region
          %712 = vsyncadd %s704, 0
          %s713 = smul.addr %s22, 16
          %s714 = smul.addr %s713, 8
          %s715 = scalar_lea.hbm %s5, %s714
          %s716 = sshll.u32 %s707, 4
          %s717 = int_to_ptr.vmem [resolvable:$true] %s716
          %s718 = sshll.u32 %s715, 4
          %s719 = int_to_ptr.hbm [resolvable:$true] %s718
          %724 = dma.vmem_to_hbm [thread:$0]  %s717, 2048, %s719, %s704, 256, 256, 16
        $region48: #{tpu_custom_call.1} parent=39 // pred_fallthru
          _
      $region40: #{tpu_custom_call.1} parent=5 // pred_fallthru
        _
      %p725 = scmp.le.s32.totalorder 2, %s17
      // Predicated region
      $region49: #{tpu_custom_call.1} parent=5 // pred_check
        %p726 = pneg %p725
      $region50: #{tpu_custom_call.1} parent=5 // pred_check_branch
        %728 = sbr.rel (%p726) target = $region52
      $region51: #{tpu_custom_call.1} parent=5 // pred_region
        %s729 = ssub.s32 %s17, 2
        // Predicated region
        $region53: #{tpu_custom_call.1} parent=51 // pred_check
          %p730 = pneg %p156
        $region54: #{tpu_custom_call.1} parent=51 // pred_check_branch
          %732 = sbr.rel (%p730) target = $region56
        $region55: #{tpu_custom_call.1} parent=51 // pred_region
          %s733 = sand.u32 %s141, 1
          %s734 = scalar_lea.sflag [#allocation4], %s733
          %s735 = sand.u32 %s141, 1
          %s736 = smul.addr %s735, 128
          %s737 = scalar_lea.vmem [#allocation5], %s736
          %739 = dma.done %s734, 2048
        $region56: #{tpu_custom_call.1} parent=51 // pred_fallthru
          _
      $region52: #{tpu_custom_call.1} parent=5 // pred_fallthru
        _
    $region6: #{tpu_custom_call.1} parent=1 // loop_footer
      %s21 = sadd.s32 1, %s17
    $region7: #{tpu_custom_call.1} parent=1 // loop_footer_branch
      %16 = sbr.rel target = $region3
    $region8: #{tpu_custom_call.1} parent=1 // loop_exit
      _
    %740 = vsyncpa [#allocation3], 1
    %s741 = scalar_lea.sflag [#allocation3], 1
    %742 = vsyncpa %s741, 1
    %743 = vsyncpa [#allocation4], 1
    %s744 = scalar_lea.sflag [#allocation4], 1
    %745 = vsyncpa %s744, 1

</llo_original>
